<compile_context>
chip_gen: v6e
topology: v6e:2x2x1
jax: 0.10.0
libtpu: 0.0.40
codegen_flags: <defaults>
</compile_context>

<pallas_src>
import functools

import jax
import jax.numpy as jnp
from jax.experimental import pallas as pl
from jax.experimental.pallas import tpu as pltpu

EMBEDDING_LEN = 128
NEG_SLOPE = 0.01          # PyTorch F.leaky_relu default negative_slope
BN_EPS = 1e-5


def _round_up(x, m):
    return ((x + m - 1) // m) * m


def _default_vmem_limit():
    """Generation-aware VMEM scope: 0.75x physical capacity, capped at 96 MiB."""
    try:
        cap = pltpu.get_tpu_info().vmem_capacity_bytes
    except Exception:
        cap = 64 * 1024 * 1024        # conservative (v7x-sized) fallback
    return min(int(0.75 * cap), 96 * 1024 * 1024)


_VMEM_LIMIT = _default_vmem_limit()


# ---------------------------------------------------------------------------
# Pallas kernels
# ---------------------------------------------------------------------------
def _matmul_bias_kernel(a_ref, w_ref, b_ref, o_ref, *, apply_lrelu):
    # bf16 x bf16 -> f32 accumulate on the MXU.
    acc = jnp.dot(a_ref[...], w_ref[...], preferred_element_type=jnp.float32)
    acc = acc + b_ref[...]                       # (1, N) broadcast over rows
    if apply_lrelu:
        acc = jnp.where(acc >= 0, acc, NEG_SLOPE * acc)
    o_ref[...] = acc


def _bn_lrelu_kernel(x_ref, g_ref, b_ref, o_ref):
    # Training-mode BN over axis 0 (per channel), single-pass statistics.
    x = x_ref[...]                               # (M, CB) f32
    m = x.shape[0]
    inv_m = 1.0 / m
    s1 = jnp.sum(x, axis=0, keepdims=True)
    s2 = jnp.sum(x * x, axis=0, keepdims=True)
    mean = s1 * inv_m
    var = jnp.maximum(s2 * inv_m - mean * mean, 0.0)   # biased variance
    scale = jax.lax.rsqrt(var + BN_EPS) * g_ref[...]
    y = (x - mean) * scale + b_ref[...]
    o_ref[...] = jnp.where(y >= 0, y, NEG_SLOPE * y)


# ---------------------------------------------------------------------------
# Kernel wrappers
# ---------------------------------------------------------------------------
def pallas_matmul_bias(a, w, b, *, apply_lrelu=False, tm=512):
    """(M, K) @ (K, N) + b, optional fused LeakyReLU.

    M-tiled grid ("parallel"), bf16 operands, f32 accumulation. K and N are
    kept unblocked (they are small); weights/bias stay resident in VMEM.
    """
    m, k = a.shape
    k2, n = w.shape
    assert k == k2, (k, k2)

    tm = min(tm, _round_up(m, 8))
    m_pad = _round_up(m, tm)
    a_p = a if m_pad == m else jnp.pad(a, ((0, m_pad - m), (0, 0)))

    a_bf = a_p.astype(jnp.bfloat16)
    w_bf = w.astype(jnp.bfloat16)
    b2 = b.reshape(1, n).astype(jnp.float32)

    grid_m = m_pad // tm
    cost = pl.CostEstimate(
        flops=2 * m_pad * k * n,
        transcendentals=0,
        bytes_accessed=m_pad * k * 2 + k * n * 2 + m_pad * n * 4,
    )

    kern = functools.partial(_matmul_bias_kernel, apply_lrelu=apply_lrelu)
    out = pl.pallas_call(
        kern,
        out_shape=jax.ShapeDtypeStruct((m_pad, n), jnp.float32),
        grid=(grid_m,),
        in_specs=[
            pl.BlockSpec((tm, k), lambda i: (i, 0)),
            pl.BlockSpec((k, n), lambda i: (0, 0)),
            pl.BlockSpec((1, n), lambda i: (0, 0)),
        ],
        out_specs=pl.BlockSpec((tm, n), lambda i: (i, 0)),
        compiler_params=pltpu.CompilerParams(
            dimension_semantics=("parallel",),
            vmem_limit_bytes=_VMEM_LIMIT,
        ),
        cost_estimate=cost,
    )(a_bf, w_bf, b2)

    return out if m_pad == m else out[:m]


def pallas_bn_lrelu(x, gamma, beta, *, cb=128):
    """Training-mode batch norm over axis 0 + LeakyReLU, channel-tiled grid."""
    m, c = x.shape
    assert c % cb == 0, (c, cb)
    grid_c = c // cb
    return pl.pallas_call(
        _bn_lrelu_kernel,
        out_shape=jax.ShapeDtypeStruct((m, c), jnp.float32),
        grid=(grid_c,),
        in_specs=[
            pl.BlockSpec((m, cb), lambda j: (0, j)),
            pl.BlockSpec((1, cb), lambda j: (0, j)),
            pl.BlockSpec((1, cb), lambda j: (0, j)),
        ],
        out_specs=pl.BlockSpec((m, cb), lambda j: (0, j)),
        compiler_params=pltpu.CompilerParams(
            dimension_semantics=("parallel",),
            vmem_limit_bytes=_VMEM_LIMIT,
        ),
    )(x.astype(jnp.float32),
      gamma.reshape(1, -1).astype(jnp.float32),
      beta.reshape(1, -1).astype(jnp.float32))


# ---------------------------------------------------------------------------
# im2col glue (JAX, NHWC) — patch columns ordered (kh, kw, cin) to match the
# HWIO-flattened conv weight matrix.
# ---------------------------------------------------------------------------
def im2col_nhwc(x_nhwc, k=4, stride=2, pad=1):
    n, h, w, c = x_nhwc.shape
    xp = jnp.pad(x_nhwc, ((0, 0), (pad, pad), (pad, pad), (0, 0)))
    oh = (h + 2 * pad - k) // stride + 1
    ow = (w + 2 * pad - k) // stride + 1
    cols = []
    for di in range(k):
        for dj in range(k):
            cols.append(xp[:, di:di + stride * oh:stride,
                           dj:dj + stride * ow:stride, :])
    patches = jnp.stack(cols, axis=3)               # (N, OH, OW, k*k, C)
    return patches.reshape(n * oh * ow, k * k * c), (n, oh, ow)


def conv2d_pallas(x_nhwc, w_mat, bias, *, apply_lrelu=False, k=4, stride=2, pad=1):
    """Conv via im2col + tiled Pallas matmul. Input/output stay NHWC."""
    cout = w_mat.shape[1]
    a, (n, oh, ow) = im2col_nhwc(x_nhwc.astype(jnp.bfloat16), k=k,
                                 stride=stride, pad=pad)
    out = pallas_matmul_bias(a, w_mat, bias, apply_lrelu=apply_lrelu)
    return out.reshape(n, oh, ow, cout)             # NHWC, no transpose


# ---------------------------------------------------------------------------
# Parameters: PyTorch-layout init (custom reset_parameters), then a one-time
# re-layout pass to matmul-ready / NHWC-compatible forms.
# ---------------------------------------------------------------------------
def init_params(key):
    ks = jax.random.split(key, 6)

    def conv_w(k, cout, cin, ksz):
        stdv = (6.0 / ((cin + cout) * ksz * ksz)) ** 0.5
        return jax.random.uniform(k, (cout, cin, ksz, ksz), jnp.float32, -stdv, stdv)

    def lin_w(k, cout, cin):
        stdv = (6.0 / (cin + cout)) ** 0.5
        return jax.random.uniform(k, (cout, cin), jnp.float32, -stdv, stdv)

    return {
        "conv1_w": conv_w(ks[0], 64, 3, 4),    "conv1_b": jnp.zeros((64,), jnp.float32),
        "conv2_w": conv_w(ks[1], 128, 64, 4),  "conv2_b": jnp.zeros((128,), jnp.float32),
        "conv3_w": conv_w(ks[2], 256, 128, 4), "conv3_b": jnp.zeros((256,), jnp.float32),
        "fc1_w": lin_w(ks[3], 1024, 256 * 16), "fc1_b": jnp.zeros((1024,), jnp.float32),
        "fc2_w": lin_w(ks[4], 1, 1024),        "fc2_b": jnp.zeros((1,), jnp.float32),
        "fc1q_w": lin_w(ks[5], EMBEDDING_LEN, 1024),
        "fc1q_b": jnp.zeros((EMBEDDING_LEN,), jnp.float32),
        "bn1_g": jnp.ones((128,), jnp.float32),  "bn1_b": jnp.zeros((128,), jnp.float32),
        "bn2_g": jnp.ones((256,), jnp.float32),  "bn2_b": jnp.zeros((256,), jnp.float32),
        "bn3_g": jnp.ones((1024,), jnp.float32), "bn3_b": jnp.zeros((1024,), jnp.float32),
        "bnq_g": jnp.ones((EMBEDDING_LEN,), jnp.float32),
        "bnq_b": jnp.zeros((EMBEDDING_LEN,), jnp.float32),
    }


def prepare_params(p):
    """One-time weight re-layout: OIHW -> (KH*KW*Cin, Cout); fc1 row-permute so
    the NHWC flatten matches PyTorch's NCHW .view(); fuse the two heads into a
    single lane-dense (1024, 256) matrix (cols 0:128 = fc1_q, col 128 = fc2)."""
    def conv_mat(w_oihw):
        cout, cin, kh, kw = w_oihw.shape
        return jnp.transpose(w_oihw, (2, 3, 1, 0)).reshape(kh * kw * cin, cout)

    # fc1: PyTorch input index = c*16 + h*4 + w; ours = (h*4 + w)*256 + c.
    fc1_t = p["fc1_w"].T.reshape(256, 4, 4, 1024)          # (c, h, w, out)
    fc1_t = jnp.transpose(fc1_t, (1, 2, 0, 3)).reshape(4096, 1024)

    head_w = jnp.zeros((1024, 256), jnp.float32)
    head_w = head_w.at[:, :EMBEDDING_LEN].set(p["fc1q_w"].T)
    head_w = head_w.at[:, EMBEDDING_LEN].set(p["fc2_w"][0, :])
    head_b = jnp.zeros((256,), jnp.float32)
    head_b = head_b.at[:EMBEDDING_LEN].set(p["fc1q_b"])
    head_b = head_b.at[EMBEDDING_LEN].set(p["fc2_b"][0])

    return {
        "conv1_w": conv_mat(p["conv1_w"]), "conv1_b": p["conv1_b"],
        "conv2_w": conv_mat(p["conv2_w"]), "conv2_b": p["conv2_b"],
        "conv3_w": conv_mat(p["conv3_w"]), "conv3_b": p["conv3_b"],
        "fc1_w": fc1_t, "fc1_b": p["fc1_b"],
        "head_w": head_w, "head_b": head_b,
        "bn1_g": p["bn1_g"], "bn1_b": p["bn1_b"],
        "bn2_g": p["bn2_g"], "bn2_b": p["bn2_b"],
        "bn3_g": p["bn3_g"], "bn3_b": p["bn3_b"],
        "bnq_g": p["bnq_g"], "bnq_b": p["bnq_b"],
    }


# ---------------------------------------------------------------------------
# Forward pass (activations NHWC end-to-end)
# ---------------------------------------------------------------------------
def discriminator_forward(pp, x_nchw):
    n = x_nchw.shape[0]
    x = jnp.transpose(x_nchw, (0, 2, 3, 1))                  # NHWC once

    # conv1 + leaky_relu (fused in matmul epilogue)
    h1 = conv2d_pallas(x, pp["conv1_w"], pp["conv1_b"], apply_lrelu=True)   # (N,16,16,64)

    # conv2 -> bn1 -> leaky_relu
    h2 = conv2d_pallas(h1, pp["conv2_w"], pp["conv2_b"])                    # (N,8,8,128)
    h2 = pallas_bn_lrelu(h2.reshape(n * 64, 128), pp["bn1_g"], pp["bn1_b"])
    h2 = h2.reshape(n, 8, 8, 128)

    # conv3 -> bn2 -> leaky_relu
    h3 = conv2d_pallas(h2, pp["conv3_w"], pp["conv3_b"])                    # (N,4,4,256)
    h3 = pallas_bn_lrelu(h3.reshape(n * 16, 256), pp["bn2_g"], pp["bn2_b"])

    # flatten: rows are (n, h, w); per-sample order is (h, w, c).  fc1_w rows
    # were permuted at init so this matches PyTorch's .view(-1, 256*4*4).
    flat = h3.reshape(n, 4 * 4 * 256)

    # fc1 -> bn3 -> leaky_relu
    f1 = pallas_matmul_bias(flat, pp["fc1_w"], pp["fc1_b"])
    f1 = pallas_bn_lrelu(f1, pp["bn3_g"], pp["bn3_b"])                      # (N, 1024)

    # fused heads: cols [0:128] = fc1_q, col 128 = fc2, cols 129:256 = zero pad
    heads = pallas_matmul_bias(f1, pp["head_w"], pp["head_b"])              # (N, 256)
    d_out = heads[:, EMBEDDING_LEN:EMBEDDING_LEN + 1]                       # (N, 1)
    q = heads[:, :EMBEDDING_LEN]                                            # (N, 128)
    q_out = pallas_bn_lrelu(q, pp["bnq_g"], pp["bnq_b"])                    # (N, 128)

    return d_out, q_out


if __name__ == "__main__":
    key = jax.random.PRNGKey(0)
    pkey, xkey = jax.random.split(key)
    params = prepare_params(init_params(pkey))

    # CIFAR10-shaped input (architecture requires 3x32x32), small batch.
    x = jax.random.normal(xkey, (2, 3, 32, 32), jnp.float32)

    d_out, q_out = discriminator_forward(params, x)
    jax.block_until_ready((d_out, q_out))
    assert d_out.shape == (2, 1) and q_out.shape == (2, EMBEDDING_LEN)
    print("KERNEL_OK")
</pallas_src>

<mosaic_0001>
module attributes {stable_mosaic.version = 11 : i64} {
  func.func @_matmul_bias_kernel(%arg0: i32, %arg1: memref<512x48xbf16, #tpu.memory_space<vmem>>, %arg2: memref<48x64xbf16, #tpu.memory_space<vmem>>, %arg3: memref<1x64xf32, #tpu.memory_space<vmem>>, %arg4: memref<512x64xf32, #tpu.memory_space<vmem>>) attributes {dimension_semantics = [#tpu.dimension_semantics<parallel>], iteration_bounds = array<i64: 1>, scalar_prefetch = 0 : i64, scratch_operands = 0 : i64, tpu.core_type = #tpu.core_type<tc>, window_params = [{transform_indices = @transform_0, window_bounds = array<i64: 512, 48>}, {pipeline_mode = #tpu.pipeline_mode<synchronous>, transform_indices = @transform_1, window_bounds = array<i64: 48, 64>}, {pipeline_mode = #tpu.pipeline_mode<synchronous>, transform_indices = @transform_2, window_bounds = array<i64: 1, 64>}, {transform_indices = @transform_3, window_bounds = array<i64: 512, 64>}]} {
    %c0 = arith.constant 0 : index
    %c0_0 = arith.constant 0 : index
    %0 = vector.load %arg1[%c0, %c0_0] : memref<512x48xbf16, #tpu.memory_space<vmem>>, vector<512x48xbf16>
    %c0_1 = arith.constant 0 : index
    %c0_2 = arith.constant 0 : index
    %1 = vector.load %arg2[%c0_1, %c0_2] : memref<48x64xbf16, #tpu.memory_space<vmem>>, vector<48x64xbf16>
    %cst = arith.constant dense<0.000000e+00> : vector<512x64xf32>
    %2 = tpu.matmul %0, %1, %cst {dimension_numbers = #tpu.dot_dimension_numbers<[1], [0], [0], [1], [0, 0, 1, 1], [], []>} : vector<512x48xbf16>, vector<48x64xbf16>, vector<512x64xf32> -> vector<512x64xf32>
    %c0_3 = arith.constant 0 : index
    %c0_4 = arith.constant 0 : index
    %3 = vector.load %arg3[%c0_3, %c0_4] : memref<1x64xf32, #tpu.memory_space<vmem>>, vector<1x64xf32>
    %4 = vector.broadcast %3 : vector<1x64xf32> to vector<512x64xf32>
    %5 = arith.addf %2, %4 : vector<512x64xf32>
    %cst_5 = arith.constant 0.000000e+00 : f32
    %6 = vector.broadcast %cst_5 : f32 to vector<512x64xf32>
    %7 = arith.cmpf oge, %5, %6 : vector<512x64xf32>
    %cst_6 = arith.constant 0.00999999977 : f32
    %8 = vector.broadcast %cst_6 : f32 to vector<512x64xf32>
    %9 = arith.mulf %8, %5 : vector<512x64xf32>
    %10 = arith.select %7, %5, %9 : vector<512x64xi1>, vector<512x64xf32>
    %c0_7 = arith.constant 0 : index
    %c0_8 = arith.constant 0 : index
    %11 = vector.load %arg4[%c0_7, %c0_8] : memref<512x64xf32, #tpu.memory_space<vmem>>, vector<512x64xf32>
    tpu.vector_store %arg4[%c0_7, %c0_8], %10 {strides = array<i32>} : memref<512x64xf32, #tpu.memory_space<vmem>>, vector<512x64xf32>,
    return
  }
  func.func @transform_0(%arg0: i32) -> (i32, i32) {
    %c0_i32 = arith.constant 0 : i32
    %c0_i32_0 = arith.constant 0 : i32
    return %arg0, %c0_i32 : i32, i32
  }
  func.func @transform_1(%arg0: i32) -> (i32, i32) {
    %c0_i32 = arith.constant 0 : i32
    %c0_i32_0 = arith.constant 0 : i32
    %c0_i32_1 = arith.constant 0 : i32
    return %c0_i32, %c0_i32_0 : i32, i32
  }
  func.func @transform_2(%arg0: i32) -> (i32, i32) {
    %c0_i32 = arith.constant 0 : i32
    %c0_i32_0 = arith.constant 0 : i32
    %c0_i32_1 = arith.constant 0 : i32
    return %c0_i32, %c0_i32_0 : i32, i32
  }
  func.func @transform_3(%arg0: i32) -> (i32, i32) {
    %c0_i32 = arith.constant 0 : i32
    %c0_i32_0 = arith.constant 0 : i32
    return %arg0, %c0_i32 : i32, i32
  }
}

</mosaic_0001>

<llo_original>
// kernel: tpu_custom_call.1
$region0: #{tpu_custom_call.1}
  #allocation0 [shape = 'u32[]', space=smem, size = 0x4, offset = 0x4, fixed_abs, tag = 'smem constant byte address 0x4 - core index']
  #allocation1 [shape = 'u32[144,128]{1,0:T(1,128)}', space=vmem, size = 0x12000, scoped, tag = 'internal scratch']
  %s0 = inlined_call_operand.vmem [shape: bf16[512,48], index: 0, kind: input, shape index: {}]
  %s1 = inlined_call_operand.vmem [shape: bf16[48,64], index: 1, kind: input, shape index: {}]
  %s2 = inlined_call_operand.vmem [shape: f32[1,64], index: 2, kind: input, shape index: {}]
  %s3 = inlined_call_operand.vmem [shape: f32[512,64], index: 3, kind: output, shape index: {}]
  %s4 = sld [smem:[#allocation0]]
  $region22: #{tpu_custom_call.1} parent=0
    _
  %s6 = ssub.s32 1, %s4
  %s7 = scalar_select 0, %s6, %s4
  // Predicated region
  $region2: #{tpu_custom_call.1} parent=0 // pred_check
    _
  $region3: #{tpu_custom_call.1} parent=0 // pred_check_branch
    %9 = sbr.rel (0) target = $region5
  $region4: #{tpu_custom_call.1} parent=0 // pred_region
    _
  $region5: #{tpu_custom_call.1} parent=0 // pred_fallthru
    _
  // Predicated region
  $region6: #{tpu_custom_call.1} parent=0 // pred_check
    _
  $region7: #{tpu_custom_call.1} parent=0 // pred_check_branch
    %11 = sbr.rel (0) target = $region9
  $region8: #{tpu_custom_call.1} parent=0 // pred_region
    _
  $region9: #{tpu_custom_call.1} parent=0 // pred_fallthru
    _
  // Predicated region
  $region10: #{tpu_custom_call.1} parent=0 // pred_check
    _
  $region11: #{tpu_custom_call.1} parent=0 // pred_check_branch
    %13 = sbr.rel (0) target = $region13
  $region12: #{tpu_custom_call.1} parent=0 // pred_region
    _
  $region13: #{tpu_custom_call.1} parent=0 // pred_fallthru
    _
  %v15 = vld [vmem:[%s0] sm:$0xf]
  %v16 = vld [vmem:[%s0 + $0x4] sm:$0xf]
  %v17 = vld [vmem:[%s0 + $0x8] sm:$0xf]
  %v18 = vld [vmem:[%s0 + $0xc] sm:$0xf]
  %v19 = vld [vmem:[%s0 + $0x10] sm:$0xf]
  %v20 = vld [vmem:[%s0 + $0x14] sm:$0xf]
  %v21 = vld [vmem:[%s0 + $0x18] sm:$0xf]
  %v22 = vld [vmem:[%s0 + $0x1c] sm:$0xf]
  %v23 = vld [vmem:[%s0 + $0x20] sm:$0xf]
  %v24 = vld [vmem:[%s0 + $0x24] sm:$0xf]
  %v25 = vld [vmem:[%s0 + $0x28] sm:$0xf]
  %v26 = vld [vmem:[%s0 + $0x2c] sm:$0xf]
  %v27 = vld [vmem:[%s0 + $0x30] sm:$0xf]
  %v28 = vld [vmem:[%s0 + $0x34] sm:$0xf]
  %v29 = vld [vmem:[%s0 + $0x38] sm:$0xf]
  %v30 = vld [vmem:[%s0 + $0x3c] sm:$0xf]
  %v31 = vld [vmem:[%s0 + $0x40] sm:$0xf]
  %v32 = vld [vmem:[%s0 + $0x44] sm:$0xf]
  %v33 = vld [vmem:[%s0 + $0x48] sm:$0xf]
  %v34 = vld [vmem:[%s0 + $0x4c] sm:$0xf]
  %v35 = vld [vmem:[%s0 + $0x50] sm:$0xf]
  %v36 = vld [vmem:[%s0 + $0x54] sm:$0xf]
  %v37 = vld [vmem:[%s0 + $0x58] sm:$0xf]
  %v38 = vld [vmem:[%s0 + $0x5c] sm:$0xf]
  %v39 = vld [vmem:[%s0 + $0x60] sm:$0xf]
  %v40 = vld [vmem:[%s0 + $0x64] sm:$0xf]
  %v41 = vld [vmem:[%s0 + $0x68] sm:$0xf]
  %v42 = vld [vmem:[%s0 + $0x6c] sm:$0xf]
  %v43 = vld [vmem:[%s0 + $0x70] sm:$0xf]
  %v44 = vld [vmem:[%s0 + $0x74] sm:$0xf]
  %v45 = vld [vmem:[%s0 + $0x78] sm:$0xf]
  %v46 = vld [vmem:[%s0 + $0x7c] sm:$0xf]
  %v47 = vld [vmem:[%s0 + $0x80] sm:$0xf]
  %v48 = vld [vmem:[%s0 + $0x84] sm:$0xf]
  %v49 = vld [vmem:[%s0 + $0x88] sm:$0xf]
  %v50 = vld [vmem:[%s0 + $0x8c] sm:$0xf]
  %v51 = vld [vmem:[%s0 + $0x90] sm:$0xf]
  %v52 = vld [vmem:[%s0 + $0x94] sm:$0xf]
  %v53 = vld [vmem:[%s0 + $0x98] sm:$0xf]
  %v54 = vld [vmem:[%s0 + $0x9c] sm:$0xf]
  %v55 = vld [vmem:[%s0 + $0xa0] sm:$0xf]
  %v56 = vld [vmem:[%s0 + $0xa4] sm:$0xf]
  %v57 = vld [vmem:[%s0 + $0xa8] sm:$0xf]
  %v58 = vld [vmem:[%s0 + $0xac] sm:$0xf]
  %v59 = vld [vmem:[%s0 + $0xb0] sm:$0xf]
  %v60 = vld [vmem:[%s0 + $0xb4] sm:$0xf]
  %v61 = vld [vmem:[%s0 + $0xb8] sm:$0xf]
  %v62 = vld [vmem:[%s0 + $0xbc] sm:$0xf]
  %v63 = vld [vmem:[%s0 + $0xc0] sm:$0xf]
  %v64 = vld [vmem:[%s0 + $0xc4] sm:$0xf]
  %v65 = vld [vmem:[%s0 + $0xc8] sm:$0xf]
  %v66 = vld [vmem:[%s0 + $0xcc] sm:$0xf]
  %v67 = vld [vmem:[%s0 + $0xd0] sm:$0xf]
  %v68 = vld [vmem:[%s0 + $0xd4] sm:$0xf]
  %v69 = vld [vmem:[%s0 + $0xd8] sm:$0xf]
  %v70 = vld [vmem:[%s0 + $0xdc] sm:$0xf]
  %v71 = vld [vmem:[%s0 + $0xe0] sm:$0xf]
  %v72 = vld [vmem:[%s0 + $0xe4] sm:$0xf]
  %v73 = vld [vmem:[%s0 + $0xe8] sm:$0xf]
  %v74 = vld [vmem:[%s0 + $0xec] sm:$0xf]
  %v75 = vld [vmem:[%s0 + $0xf0] sm:$0xf]
  %v76 = vld [vmem:[%s0 + $0xf4] sm:$0xf]
  %v77 = vld [vmem:[%s0 + $0xf8] sm:$0xf]
  %v78 = vld [vmem:[%s0 + $0xfc] sm:$0xf]
  %v79 = vld [vmem:[%s1] sm:$0xf]
  %v80 = vld [vmem:[%s1 + $0x4] sm:$0xf]
  %v81 = vld [vmem:[%s1 + $0x8] sm:$0xf]
  %v82 = vld [vmem:[%s1 + $0xc] sm:$0xf]
  %v83 = vld [vmem:[%s1 + $0x10] sm:$0xf]
  %v84 = vld [vmem:[%s1 + $0x14] sm:$0xf]
  %v85 = vld [vmem:[%s2] sm:$0x1]
  %v87 = vlaneseq
  %v88 = vshrl.u32 %v87, 7
  %v89 = vsub.s32 0, %v88
  %v90 = vrot.slane %v85, %v89
  %v156 = vunpack.c.l.b16 %v15
  %v157 = vunpack.c.l.b16 %v16
  %v158 = vunpack.c.l.b16 %v17
  %v159 = vunpack.c.l.b16 %v18
  %v160 = vunpack.c.l.b16 %v19
  %v161 = vunpack.c.l.b16 %v20
  %v162 = vunpack.c.l.b16 %v21
  %v163 = vunpack.c.l.b16 %v22
  %v164 = vunpack.c.l.b16 %v23
  %v165 = vunpack.c.l.b16 %v24
  %v166 = vunpack.c.l.b16 %v25
  %v167 = vunpack.c.l.b16 %v26
  %v168 = vunpack.c.l.b16 %v27
  %v169 = vunpack.c.l.b16 %v28
  %v170 = vunpack.c.l.b16 %v29
  %v171 = vunpack.c.l.b16 %v30
  %v172 = vunpack.c.l.b16 %v31
  %v173 = vunpack.c.l.b16 %v32
  %v174 = vunpack.c.l.b16 %v33
  %v175 = vunpack.c.l.b16 %v34
  %v176 = vunpack.c.l.b16 %v35
  %v177 = vunpack.c.l.b16 %v36
  %v178 = vunpack.c.l.b16 %v37
  %v179 = vunpack.c.l.b16 %v38
  %v180 = vunpack.c.l.b16 %v39
  %v181 = vunpack.c.l.b16 %v40
  %v182 = vunpack.c.l.b16 %v41
  %v183 = vunpack.c.l.b16 %v42
  %v184 = vunpack.c.l.b16 %v43
  %v185 = vunpack.c.l.b16 %v44
  %v186 = vunpack.c.l.b16 %v45
  %v187 = vunpack.c.l.b16 %v46
  %v188 = vunpack.c.l.b16 %v47
  %v189 = vunpack.c.l.b16 %v48
  %v190 = vunpack.c.l.b16 %v49
  %v191 = vunpack.c.l.b16 %v50
  %v192 = vunpack.c.l.b16 %v51
  %v193 = vunpack.c.l.b16 %v52
  %v194 = vunpack.c.l.b16 %v53
  %v195 = vunpack.c.l.b16 %v54
  %v196 = vunpack.c.l.b16 %v55
  %v197 = vunpack.c.l.b16 %v56
  %v198 = vunpack.c.l.b16 %v57
  %v199 = vunpack.c.l.b16 %v58
  %v200 = vunpack.c.l.b16 %v59
  %v201 = vunpack.c.l.b16 %v60
  %v202 = vunpack.c.l.b16 %v61
  %v203 = vunpack.c.l.b16 %v62
  %v204 = vunpack.c.l.b16 %v63
  %v205 = vunpack.c.l.b16 %v64
  %v206 = vunpack.c.l.b16 %v65
  %v207 = vunpack.c.l.b16 %v66
  %v208 = vunpack.c.l.b16 %v67
  %v209 = vunpack.c.l.b16 %v68
  %v210 = vunpack.c.l.b16 %v69
  %v211 = vunpack.c.l.b16 %v70
  %v212 = vunpack.c.l.b16 %v71
  %v213 = vunpack.c.l.b16 %v72
  %v214 = vunpack.c.l.b16 %v73
  %v215 = vunpack.c.l.b16 %v74
  %v216 = vunpack.c.l.b16 %v75
  %v217 = vunpack.c.l.b16 %v76
  %v218 = vunpack.c.l.b16 %v77
  %v219 = vunpack.c.l.b16 %v78
  %v220 = vpack.c.b16 %v157, %v156
  %v221 = vpack.c.b16 %v159, %v158
  %v222 = vpack.c.b16 %v161, %v160
  %v223 = vpack.c.b16 %v163, %v162
  %v224 = vpack.c.b16 %v165, %v164
  %v225 = vpack.c.b16 %v167, %v166
  %v226 = vpack.c.b16 %v169, %v168
  %v227 = vpack.c.b16 %v171, %v170
  %v228 = vpack.c.b16 %v173, %v172
  %v229 = vpack.c.b16 %v175, %v174
  %v230 = vpack.c.b16 %v177, %v176
  %v231 = vpack.c.b16 %v179, %v178
  %v232 = vpack.c.b16 %v181, %v180
  %v233 = vpack.c.b16 %v183, %v182
  %v234 = vpack.c.b16 %v185, %v184
  %v235 = vpack.c.b16 %v187, %v186
  %v236 = vpack.c.b16 %v189, %v188
  %v237 = vpack.c.b16 %v191, %v190
  %v238 = vpack.c.b16 %v193, %v192
  %v239 = vpack.c.b16 %v195, %v194
  %v240 = vpack.c.b16 %v197, %v196
  %v241 = vpack.c.b16 %v199, %v198
  %v242 = vpack.c.b16 %v201, %v200
  %v243 = vpack.c.b16 %v203, %v202
  %v244 = vpack.c.b16 %v205, %v204
  %v245 = vpack.c.b16 %v207, %v206
  %v246 = vpack.c.b16 %v209, %v208
  %v247 = vpack.c.b16 %v211, %v210
  %v248 = vpack.c.b16 %v213, %v212
  %v249 = vpack.c.b16 %v215, %v214
  %v250 = vpack.c.b16 %v217, %v216
  %v251 = vpack.c.b16 %v219, %v218
  %v258 = vunpack.c.l.b16 %v79
  %v259 = vunpack.c.l.b16 %v80
  %v260 = vunpack.c.l.b16 %v81
  %v261 = vunpack.c.l.b16 %v82
  %v262 = vunpack.c.l.b16 %v83
  %v263 = vunpack.c.l.b16 %v84
  %v264 = vpack.c.b16 %v259, %v258
  %v265 = vpack.c.b16 %v261, %v260
  %v266 = vpack.c.b16 %v263, %v262
  %vm270 = vcmask 392192
  %v272 = vsel %vm270, %v220, 0
  %v275 = vsel %vm270, %v221, 0
  %v278 = vsel %vm270, %v222, 0
  %v281 = vsel %vm270, %v223, 0
  %v284 = vsel %vm270, %v224, 0
  %v287 = vsel %vm270, %v225, 0
  %v290 = vsel %vm270, %v226, 0
  %v293 = vsel %vm270, %v227, 0
  %v296 = vsel %vm270, %v228, 0
  %v299 = vsel %vm270, %v229, 0
  %v302 = vsel %vm270, %v230, 0
  %v305 = vsel %vm270, %v231, 0
  %v308 = vsel %vm270, %v232, 0
  %v311 = vsel %vm270, %v233, 0
  %v314 = vsel %vm270, %v234, 0
  %v317 = vsel %vm270, %v235, 0
  %v320 = vsel %vm270, %v236, 0
  %v323 = vsel %vm270, %v237, 0
  %v326 = vsel %vm270, %v238, 0
  %v329 = vsel %vm270, %v239, 0
  %v332 = vsel %vm270, %v240, 0
  %v335 = vsel %vm270, %v241, 0
  %v338 = vsel %vm270, %v242, 0
  %v341 = vsel %vm270, %v243, 0
  %v344 = vsel %vm270, %v244, 0
  %v347 = vsel %vm270, %v245, 0
  %v350 = vsel %vm270, %v246, 0
  %v353 = vsel %vm270, %v247, 0
  %v356 = vsel %vm270, %v248, 0
  %v359 = vsel %vm270, %v249, 0
  %v362 = vsel %vm270, %v250, 0
  %v365 = vsel %vm270, %v251, 0
  %367 = vmatprep.subr.bf16.mxu0 0
  %368 = vmatpush1.bf16.msra.mxu0 0
  %369 = vmatprep.subr.bf16.mxu0 0
  %370 = vmatpush1.bf16.msra.mxu0 0
  %371 = vmatprep.subr.bf16.mxu0 0
  %372 = vmatpush1.bf16.msra.mxu0 0
  %373 = vmatprep.subr.bf16.mxu0 0
  %374 = vmatpush1.bf16.msra.mxu0 0
  %375 = vmatprep.subr.bf16.mxu0 0
  %376 = vmatpush1.bf16.msra.mxu0 0
  %377 = vmatprep.subr.bf16.mxu0 0
  %378 = vmatpush1.bf16.msra.mxu0 %v266
  %379 = vmatprep.subr.bf16.mxu0 0
  %380 = vmatpush1.bf16.msra.mxu0 %v265
  %381 = vmatprep.subr.bf16.mxu0 0
  %382 = vmatpush1.bf16.msra.mxu0 %v264
  %383 = vmatprep.subr.bf16.mxu0 0
  %384 = vmatpush2.bf16.msra.mxu0 0
  %385 = vmatprep.subr.bf16.mxu0 0
  %386 = vmatpush2.bf16.msra.mxu0 0
  %387 = vmatprep.subr.bf16.mxu0 0
  %388 = vmatpush2.bf16.msra.mxu0 0
  %389 = vmatprep.subr.bf16.mxu0 0
  %390 = vmatpush2.bf16.msra.mxu0 0
  %391 = vmatprep.subr.bf16.mxu0 0
  %392 = vmatpush2.bf16.msra.mxu0 0
  %393 = vmatprep.subr.bf16.mxu0 0
  %394 = vmatpush2.bf16.msra.mxu0 0
  %395 = vmatprep.subr.bf16.mxu0 0
  %396 = vmatpush2.bf16.msra.mxu0 0
  %397 = vmatprep.subr.bf16.mxu0 0
  %398 = vmatpush2.bf16.msra.mxu0 0
  %399 = vmatprep.mubr.bf16.mxu0 0
  %400 = vmatmul.mubr.bf16.gmra.mxu0 %v272
  %v401 = vpop.f32.mrf.mxu0
  %v402 = vadd.f32 %v90, %v401
  %v403 = vpop.f32.mrf.mxu0
  %v404 = vpop.f32.mrf.mxu0
  %v405 = vadd.f32 %v90, %v404
  %v406 = vpop.f32.mrf.mxu0
  %407 = vmatprep.mubr.bf16.mxu0 0
  %408 = vmatmul.mubr.bf16.gmra.mxu0 %v275
  %v409 = vpop.f32.mrf.mxu0
  %v410 = vadd.f32 %v90, %v409
  %v411 = vpop.f32.mrf.mxu0
  %v412 = vpop.f32.mrf.mxu0
  %v413 = vadd.f32 %v90, %v412
  %v414 = vpop.f32.mrf.mxu0
  %415 = vmatprep.mubr.bf16.mxu0 0
  %416 = vmatmul.mubr.bf16.gmra.mxu0 %v278
  %v417 = vpop.f32.mrf.mxu0
  %v418 = vadd.f32 %v90, %v417
  %v419 = vpop.f32.mrf.mxu0
  %v420 = vpop.f32.mrf.mxu0
  %v421 = vadd.f32 %v90, %v420
  %v422 = vpop.f32.mrf.mxu0
  %423 = vmatprep.mubr.bf16.mxu0 0
  %424 = vmatmul.mubr.bf16.gmra.mxu0 %v281
  %v425 = vpop.f32.mrf.mxu0
  %v426 = vadd.f32 %v90, %v425
  %v427 = vpop.f32.mrf.mxu0
  %v428 = vpop.f32.mrf.mxu0
  %v429 = vadd.f32 %v90, %v428
  %v430 = vpop.f32.mrf.mxu0
  %431 = vmatprep.mubr.bf16.mxu0 0
  %432 = vmatmul.mubr.bf16.gmra.mxu0 %v284
  %v433 = vpop.f32.mrf.mxu0
  %v434 = vadd.f32 %v90, %v433
  %v435 = vpop.f32.mrf.mxu0
  %v436 = vpop.f32.mrf.mxu0
  %v437 = vadd.f32 %v90, %v436
  %v438 = vpop.f32.mrf.mxu0
  %439 = vmatprep.mubr.bf16.mxu0 0
  %440 = vmatmul.mubr.bf16.gmra.mxu0 %v287
  %v441 = vpop.f32.mrf.mxu0
  %v442 = vadd.f32 %v90, %v441
  %v443 = vpop.f32.mrf.mxu0
  %v444 = vpop.f32.mrf.mxu0
  %v445 = vadd.f32 %v90, %v444
  %v446 = vpop.f32.mrf.mxu0
  %447 = vmatprep.mubr.bf16.mxu0 0
  %448 = vmatmul.mubr.bf16.gmra.mxu0 %v290
  %v449 = vpop.f32.mrf.mxu0
  %v450 = vadd.f32 %v90, %v449
  %v451 = vpop.f32.mrf.mxu0
  %v452 = vpop.f32.mrf.mxu0
  %v453 = vadd.f32 %v90, %v452
  %v454 = vpop.f32.mrf.mxu0
  %455 = vmatprep.mubr.bf16.mxu0 0
  %456 = vmatmul.mubr.bf16.gmra.mxu0 %v293
  %v457 = vpop.f32.mrf.mxu0
  %v458 = vadd.f32 %v90, %v457
  %v459 = vpop.f32.mrf.mxu0
  %v460 = vpop.f32.mrf.mxu0
  %v461 = vadd.f32 %v90, %v460
  %v462 = vpop.f32.mrf.mxu0
  %463 = vmatprep.mubr.bf16.mxu0 0
  %464 = vmatmul.mubr.bf16.gmra.mxu0 %v296
  %v465 = vpop.f32.mrf.mxu0
  %v466 = vadd.f32 %v90, %v465
  %v467 = vpop.f32.mrf.mxu0
  %v468 = vpop.f32.mrf.mxu0
  %v469 = vadd.f32 %v90, %v468
  %v470 = vpop.f32.mrf.mxu0
  %471 = vmatprep.mubr.bf16.mxu0 0
  %472 = vmatmul.mubr.bf16.gmra.mxu0 %v299
  %v473 = vpop.f32.mrf.mxu0
  %v474 = vadd.f32 %v90, %v473
  %v475 = vpop.f32.mrf.mxu0
  %v476 = vpop.f32.mrf.mxu0
  %v477 = vadd.f32 %v90, %v476
  %v478 = vpop.f32.mrf.mxu0
  %479 = vmatprep.mubr.bf16.mxu0 0
  %480 = vmatmul.mubr.bf16.gmra.mxu0 %v302
  %v481 = vpop.f32.mrf.mxu0
  %v482 = vadd.f32 %v90, %v481
  %v483 = vpop.f32.mrf.mxu0
  %v484 = vpop.f32.mrf.mxu0
  %v485 = vadd.f32 %v90, %v484
  %v486 = vpop.f32.mrf.mxu0
  %487 = vmatprep.mubr.bf16.mxu0 0
  %488 = vmatmul.mubr.bf16.gmra.mxu0 %v305
  %v489 = vpop.f32.mrf.mxu0
  %v490 = vadd.f32 %v90, %v489
  %v491 = vpop.f32.mrf.mxu0
  %v492 = vpop.f32.mrf.mxu0
  %v493 = vadd.f32 %v90, %v492
  %v494 = vpop.f32.mrf.mxu0
  %495 = vmatprep.mubr.bf16.mxu0 0
  %496 = vmatmul.mubr.bf16.gmra.mxu0 %v308
  %v497 = vpop.f32.mrf.mxu0
  %v498 = vadd.f32 %v90, %v497
  %v499 = vpop.f32.mrf.mxu0
  %v500 = vpop.f32.mrf.mxu0
  %v501 = vadd.f32 %v90, %v500
  %v502 = vpop.f32.mrf.mxu0
  %503 = vmatprep.mubr.bf16.mxu0 0
  %504 = vmatmul.mubr.bf16.gmra.mxu0 %v311
  %v505 = vpop.f32.mrf.mxu0
  %v506 = vadd.f32 %v90, %v505
  %v507 = vpop.f32.mrf.mxu0
  %v508 = vpop.f32.mrf.mxu0
  %v509 = vadd.f32 %v90, %v508
  %v510 = vpop.f32.mrf.mxu0
  %511 = vmatprep.mubr.bf16.mxu0 0
  %512 = vmatmul.mubr.bf16.gmra.mxu0 %v314
  %v513 = vpop.f32.mrf.mxu0
  %v514 = vadd.f32 %v90, %v513
  %v515 = vpop.f32.mrf.mxu0
  %v516 = vpop.f32.mrf.mxu0
  %v517 = vadd.f32 %v90, %v516
  %v518 = vpop.f32.mrf.mxu0
  %519 = vmatprep.mubr.bf16.mxu0 0
  %520 = vmatmul.mubr.bf16.gmra.mxu0 %v317
  %v521 = vpop.f32.mrf.mxu0
  %v522 = vadd.f32 %v90, %v521
  %v523 = vpop.f32.mrf.mxu0
  %v524 = vpop.f32.mrf.mxu0
  %v525 = vadd.f32 %v90, %v524
  %v526 = vpop.f32.mrf.mxu0
  %527 = vmatprep.mubr.bf16.mxu0 0
  %528 = vmatmul.mubr.bf16.gmra.mxu0 %v320
  %v529 = vpop.f32.mrf.mxu0
  %v530 = vadd.f32 %v90, %v529
  %v531 = vpop.f32.mrf.mxu0
  %v532 = vpop.f32.mrf.mxu0
  %v533 = vadd.f32 %v90, %v532
  %v534 = vpop.f32.mrf.mxu0
  %535 = vmatprep.mubr.bf16.mxu0 0
  %536 = vmatmul.mubr.bf16.gmra.mxu0 %v323
  %v537 = vpop.f32.mrf.mxu0
  %v538 = vadd.f32 %v90, %v537
  %v539 = vpop.f32.mrf.mxu0
  %v540 = vpop.f32.mrf.mxu0
  %v541 = vadd.f32 %v90, %v540
  %v542 = vpop.f32.mrf.mxu0
  %543 = vmatprep.mubr.bf16.mxu0 0
  %544 = vmatmul.mubr.bf16.gmra.mxu0 %v326
  %v545 = vpop.f32.mrf.mxu0
  %v546 = vadd.f32 %v90, %v545
  %v547 = vpop.f32.mrf.mxu0
  %v548 = vpop.f32.mrf.mxu0
  %v549 = vadd.f32 %v90, %v548
  %v550 = vpop.f32.mrf.mxu0
  %551 = vmatprep.mubr.bf16.mxu0 0
  %552 = vmatmul.mubr.bf16.gmra.mxu0 %v329
  %v553 = vpop.f32.mrf.mxu0
  %v554 = vadd.f32 %v90, %v553
  %v555 = vpop.f32.mrf.mxu0
  %v556 = vpop.f32.mrf.mxu0
  %v557 = vadd.f32 %v90, %v556
  %v558 = vpop.f32.mrf.mxu0
  %559 = vmatprep.mubr.bf16.mxu0 0
  %560 = vmatmul.mubr.bf16.gmra.mxu0 %v332
  %v561 = vpop.f32.mrf.mxu0
  %v562 = vadd.f32 %v90, %v561
  %v563 = vpop.f32.mrf.mxu0
  %v564 = vpop.f32.mrf.mxu0
  %v565 = vadd.f32 %v90, %v564
  %v566 = vpop.f32.mrf.mxu0
  %567 = vmatprep.mubr.bf16.mxu0 0
  %568 = vmatmul.mubr.bf16.gmra.mxu0 %v335
  %v569 = vpop.f32.mrf.mxu0
  %v570 = vadd.f32 %v90, %v569
  %v571 = vpop.f32.mrf.mxu0
  %v572 = vpop.f32.mrf.mxu0
  %v573 = vadd.f32 %v90, %v572
  %v574 = vpop.f32.mrf.mxu0
  %575 = vmatprep.mubr.bf16.mxu0 0
  %576 = vmatmul.mubr.bf16.gmra.mxu0 %v338
  %v577 = vpop.f32.mrf.mxu0
  %v578 = vadd.f32 %v90, %v577
  %v579 = vpop.f32.mrf.mxu0
  %v580 = vpop.f32.mrf.mxu0
  %v581 = vadd.f32 %v90, %v580
  %v582 = vpop.f32.mrf.mxu0
  %583 = vmatprep.mubr.bf16.mxu0 0
  %584 = vmatmul.mubr.bf16.gmra.mxu0 %v341
  %v585 = vpop.f32.mrf.mxu0
  %v586 = vadd.f32 %v90, %v585
  %v587 = vpop.f32.mrf.mxu0
  %v588 = vpop.f32.mrf.mxu0
  %v589 = vadd.f32 %v90, %v588
  %v590 = vpop.f32.mrf.mxu0
  %591 = vmatprep.mubr.bf16.mxu0 0
  %592 = vmatmul.mubr.bf16.gmra.mxu0 %v344
  %v593 = vpop.f32.mrf.mxu0
  %v594 = vadd.f32 %v90, %v593
  %v595 = vpop.f32.mrf.mxu0
  %v596 = vpop.f32.mrf.mxu0
  %v597 = vadd.f32 %v90, %v596
  %v598 = vpop.f32.mrf.mxu0
  %599 = vmatprep.mubr.bf16.mxu0 0
  %600 = vmatmul.mubr.bf16.gmra.mxu0 %v347
  %v601 = vpop.f32.mrf.mxu0
  %v602 = vadd.f32 %v90, %v601
  %v603 = vpop.f32.mrf.mxu0
  %v604 = vpop.f32.mrf.mxu0
  %v605 = vadd.f32 %v90, %v604
  %v606 = vpop.f32.mrf.mxu0
  %607 = vmatprep.mubr.bf16.mxu0 0
  %608 = vmatmul.mubr.bf16.gmra.mxu0 %v350
  %v609 = vpop.f32.mrf.mxu0
  %v610 = vadd.f32 %v90, %v609
  %v611 = vpop.f32.mrf.mxu0
  %v612 = vpop.f32.mrf.mxu0
  %v613 = vadd.f32 %v90, %v612
  %v614 = vpop.f32.mrf.mxu0
  %615 = vmatprep.mubr.bf16.mxu0 0
  %616 = vmatmul.mubr.bf16.gmra.mxu0 %v353
  %v617 = vpop.f32.mrf.mxu0
  %v618 = vadd.f32 %v90, %v617
  %v619 = vpop.f32.mrf.mxu0
  %v620 = vpop.f32.mrf.mxu0
  %v621 = vadd.f32 %v90, %v620
  %v622 = vpop.f32.mrf.mxu0
  %623 = vmatprep.mubr.bf16.mxu0 0
  %624 = vmatmul.mubr.bf16.gmra.mxu0 %v356
  %v625 = vpop.f32.mrf.mxu0
  %v626 = vadd.f32 %v90, %v625
  %v627 = vpop.f32.mrf.mxu0
  %v628 = vpop.f32.mrf.mxu0
  %v629 = vadd.f32 %v90, %v628
  %v630 = vpop.f32.mrf.mxu0
  %631 = vmatprep.mubr.bf16.mxu0 0
  %632 = vmatmul.mubr.bf16.gmra.mxu0 %v359
  %v633 = vpop.f32.mrf.mxu0
  %v634 = vadd.f32 %v90, %v633
  %v635 = vpop.f32.mrf.mxu0
  %v636 = vpop.f32.mrf.mxu0
  %v637 = vadd.f32 %v90, %v636
  %v638 = vpop.f32.mrf.mxu0
  %639 = vmatprep.mubr.bf16.mxu0 0
  %640 = vmatmul.mubr.bf16.gmra.mxu0 %v362
  %v641 = vpop.f32.mrf.mxu0
  %v642 = vadd.f32 %v90, %v641
  %v643 = vpop.f32.mrf.mxu0
  %v644 = vpop.f32.mrf.mxu0
  %v645 = vadd.f32 %v90, %v644
  %v646 = vpop.f32.mrf.mxu0
  %647 = vmatprep.mubr.bf16.mxu0 0
  %648 = vmatmul.mubr.bf16.gmra.mxu0 %v365
  %v649 = vpop.f32.mrf.mxu0
  %v650 = vadd.f32 %v90, %v649
  %v651 = vpop.f32.mrf.mxu0
  %v652 = vpop.f32.mrf.mxu0
  %v653 = vadd.f32 %v90, %v652
  %v654 = vpop.f32.mrf.mxu0
  %655 = vdwg.mxu0
  %vm656 = vcmp.ge.f32.partialorder %v402, 0.0
  %vm657 = vcmp.ge.f32.partialorder %v405, 0.0
  %vm658 = vcmp.ge.f32.partialorder %v410, 0.0
  %vm659 = vcmp.ge.f32.partialorder %v413, 0.0
  %vm660 = vcmp.ge.f32.partialorder %v418, 0.0
  %vm661 = vcmp.ge.f32.partialorder %v421, 0.0
  %vm662 = vcmp.ge.f32.partialorder %v426, 0.0
  %vm663 = vcmp.ge.f32.partialorder %v429, 0.0
  %vm664 = vcmp.ge.f32.partialorder %v434, 0.0
  %vm665 = vcmp.ge.f32.partialorder %v437, 0.0
  %vm666 = vcmp.ge.f32.partialorder %v442, 0.0
  %vm667 = vcmp.ge.f32.partialorder %v445, 0.0
  %vm668 = vcmp.ge.f32.partialorder %v450, 0.0
  %vm669 = vcmp.ge.f32.partialorder %v453, 0.0
  %vm670 = vcmp.ge.f32.partialorder %v458, 0.0
  %vm671 = vcmp.ge.f32.partialorder %v461, 0.0
  %vm672 = vcmp.ge.f32.partialorder %v466, 0.0
  %vm673 = vcmp.ge.f32.partialorder %v469, 0.0
  %vm674 = vcmp.ge.f32.partialorder %v474, 0.0
  %vm675 = vcmp.ge.f32.partialorder %v477, 0.0
  %vm676 = vcmp.ge.f32.partialorder %v482, 0.0
  %vm677 = vcmp.ge.f32.partialorder %v485, 0.0
  %vm678 = vcmp.ge.f32.partialorder %v490, 0.0
  %vm679 = vcmp.ge.f32.partialorder %v493, 0.0
  %vm680 = vcmp.ge.f32.partialorder %v498, 0.0
  %vm681 = vcmp.ge.f32.partialorder %v501, 0.0
  %vm682 = vcmp.ge.f32.partialorder %v506, 0.0
  %vm683 = vcmp.ge.f32.partialorder %v509, 0.0
  %vm684 = vcmp.ge.f32.partialorder %v514, 0.0
  %vm685 = vcmp.ge.f32.partialorder %v517, 0.0
  %vm686 = vcmp.ge.f32.partialorder %v522, 0.0
  %vm687 = vcmp.ge.f32.partialorder %v525, 0.0
  %vm688 = vcmp.ge.f32.partialorder %v530, 0.0
  %vm689 = vcmp.ge.f32.partialorder %v533, 0.0
  %vm690 = vcmp.ge.f32.partialorder %v538, 0.0
  %vm691 = vcmp.ge.f32.partialorder %v541, 0.0
  %vm692 = vcmp.ge.f32.partialorder %v546, 0.0
  %vm693 = vcmp.ge.f32.partialorder %v549, 0.0
  %vm694 = vcmp.ge.f32.partialorder %v554, 0.0
  %vm695 = vcmp.ge.f32.partialorder %v557, 0.0
  %vm696 = vcmp.ge.f32.partialorder %v562, 0.0
  %vm697 = vcmp.ge.f32.partialorder %v565, 0.0
  %vm698 = vcmp.ge.f32.partialorder %v570, 0.0
  %vm699 = vcmp.ge.f32.partialorder %v573, 0.0
  %vm700 = vcmp.ge.f32.partialorder %v578, 0.0
  %vm701 = vcmp.ge.f32.partialorder %v581, 0.0
  %vm702 = vcmp.ge.f32.partialorder %v586, 0.0
  %vm703 = vcmp.ge.f32.partialorder %v589, 0.0
  %vm704 = vcmp.ge.f32.partialorder %v594, 0.0
  %vm705 = vcmp.ge.f32.partialorder %v597, 0.0
  %vm706 = vcmp.ge.f32.partialorder %v602, 0.0
  %vm707 = vcmp.ge.f32.partialorder %v605, 0.0
  %vm708 = vcmp.ge.f32.partialorder %v610, 0.0
  %vm709 = vcmp.ge.f32.partialorder %v613, 0.0
  %vm710 = vcmp.ge.f32.partialorder %v618, 0.0
  %vm711 = vcmp.ge.f32.partialorder %v621, 0.0
  %vm712 = vcmp.ge.f32.partialorder %v626, 0.0
  %vm713 = vcmp.ge.f32.partialorder %v629, 0.0
  %vm714 = vcmp.ge.f32.partialorder %v634, 0.0
  %vm715 = vcmp.ge.f32.partialorder %v637, 0.0
  %vm716 = vcmp.ge.f32.partialorder %v642, 0.0
  %vm717 = vcmp.ge.f32.partialorder %v645, 0.0
  %vm718 = vcmp.ge.f32.partialorder %v650, 0.0
  %vm719 = vcmp.ge.f32.partialorder %v653, 0.0
  %v720 = vmul.f32 %v402, 0.01
  %v721 = vmul.f32 %v405, 0.01
  %v722 = vmul.f32 %v410, 0.01
  %v723 = vmul.f32 %v413, 0.01
  %v724 = vmul.f32 %v418, 0.01
  %v725 = vmul.f32 %v421, 0.01
  %v726 = vmul.f32 %v426, 0.01
  %v727 = vmul.f32 %v429, 0.01
  %v728 = vmul.f32 %v434, 0.01
  %v729 = vmul.f32 %v437, 0.01
  %v730 = vmul.f32 %v442, 0.01
  %v731 = vmul.f32 %v445, 0.01
  %v732 = vmul.f32 %v450, 0.01
  %v733 = vmul.f32 %v453, 0.01
  %v734 = vmul.f32 %v458, 0.01
  %v735 = vmul.f32 %v461, 0.01
  %v736 = vmul.f32 %v466, 0.01
  %v737 = vmul.f32 %v469, 0.01
  %v738 = vmul.f32 %v474, 0.01
  %v739 = vmul.f32 %v477, 0.01
  %v740 = vmul.f32 %v482, 0.01
  %v741 = vmul.f32 %v485, 0.01
  %v742 = vmul.f32 %v490, 0.01
  %v743 = vmul.f32 %v493, 0.01
  %v744 = vmul.f32 %v498, 0.01
  %v745 = vmul.f32 %v501, 0.01
  %v746 = vmul.f32 %v506, 0.01
  %v747 = vmul.f32 %v509, 0.01
  %v748 = vmul.f32 %v514, 0.01
  %v749 = vmul.f32 %v517, 0.01
  %v750 = vmul.f32 %v522, 0.01
  %v751 = vmul.f32 %v525, 0.01
  %v752 = vmul.f32 %v530, 0.01
  %v753 = vmul.f32 %v533, 0.01
  %v754 = vmul.f32 %v538, 0.01
  %v755 = vmul.f32 %v541, 0.01
  %v756 = vmul.f32 %v546, 0.01
  %v757 = vmul.f32 %v549, 0.01
  %v758 = vmul.f32 %v554, 0.01
  %v759 = vmul.f32 %v557, 0.01
  %v760 = vmul.f32 %v562, 0.01
  %v761 = vmul.f32 %v565, 0.01
  %v762 = vmul.f32 %v570, 0.01
  %v763 = vmul.f32 %v573, 0.01
  %v764 = vmul.f32 %v578, 0.01
  %v765 = vmul.f32 %v581, 0.01
  %v766 = vmul.f32 %v586, 0.01
  %v767 = vmul.f32 %v589, 0.01
  %v768 = vmul.f32 %v594, 0.01
  %v769 = vmul.f32 %v597, 0.01
  %v770 = vmul.f32 %v602, 0.01
  %v771 = vmul.f32 %v605, 0.01
  %v772 = vmul.f32 %v610, 0.01
  %v773 = vmul.f32 %v613, 0.01
  %v774 = vmul.f32 %v618, 0.01
  %v775 = vmul.f32 %v621, 0.01
  %v776 = vmul.f32 %v626, 0.01
  %v777 = vmul.f32 %v629, 0.01
  %v778 = vmul.f32 %v634, 0.01
  %v779 = vmul.f32 %v637, 0.01
  %v780 = vmul.f32 %v642, 0.01
  %v781 = vmul.f32 %v645, 0.01
  %v782 = vmul.f32 %v650, 0.01
  %v783 = vmul.f32 %v653, 0.01
  %v784 = vsel %vm656, %v402, %v720
  %v785 = vsel %vm657, %v405, %v721
  %v786 = vsel %vm658, %v410, %v722
  %v787 = vsel %vm659, %v413, %v723
  %v788 = vsel %vm660, %v418, %v724
  %v789 = vsel %vm661, %v421, %v725
  %v790 = vsel %vm662, %v426, %v726
  %v791 = vsel %vm663, %v429, %v727
  %v792 = vsel %vm664, %v434, %v728
  %v793 = vsel %vm665, %v437, %v729
  %v794 = vsel %vm666, %v442, %v730
  %v795 = vsel %vm667, %v445, %v731
  %v796 = vsel %vm668, %v450, %v732
  %v797 = vsel %vm669, %v453, %v733
  %v798 = vsel %vm670, %v458, %v734
  %v799 = vsel %vm671, %v461, %v735
  %v800 = vsel %vm672, %v466, %v736
  %v801 = vsel %vm673, %v469, %v737
  %v802 = vsel %vm674, %v474, %v738
  %v803 = vsel %vm675, %v477, %v739
  %v804 = vsel %vm676, %v482, %v740
  %v805 = vsel %vm677, %v485, %v741
  %v806 = vsel %vm678, %v490, %v742
  %v807 = vsel %vm679, %v493, %v743
  %v808 = vsel %vm680, %v498, %v744
  %v809 = vsel %vm681, %v501, %v745
  %v810 = vsel %vm682, %v506, %v746
  %v811 = vsel %vm683, %v509, %v747
  %v812 = vsel %vm684, %v514, %v748
  %v813 = vsel %vm685, %v517, %v749
  %v814 = vsel %vm686, %v522, %v750
  %v815 = vsel %vm687, %v525, %v751
  %v816 = vsel %vm688, %v530, %v752
  %v817 = vsel %vm689, %v533, %v753
  %v818 = vsel %vm690, %v538, %v754
  %v819 = vsel %vm691, %v541, %v755
  %v820 = vsel %vm692, %v546, %v756
  %v821 = vsel %vm693, %v549, %v757
  %v822 = vsel %vm694, %v554, %v758
  %v823 = vsel %vm695, %v557, %v759
  %v824 = vsel %vm696, %v562, %v760
  %v825 = vsel %vm697, %v565, %v761
  %v826 = vsel %vm698, %v570, %v762
  %v827 = vsel %vm699, %v573, %v763
  %v828 = vsel %vm700, %v578, %v764
  %v829 = vsel %vm701, %v581, %v765
  %v830 = vsel %vm702, %v586, %v766
  %v831 = vsel %vm703, %v589, %v767
  %v832 = vsel %vm704, %v594, %v768
  %v833 = vsel %vm705, %v597, %v769
  %v834 = vsel %vm706, %v602, %v770
  %v835 = vsel %vm707, %v605, %v771
  %v836 = vsel %vm708, %v610, %v772
  %v837 = vsel %vm709, %v613, %v773
  %v838 = vsel %vm710, %v618, %v774
  %v839 = vsel %vm711, %v621, %v775
  %v840 = vsel %vm712, %v626, %v776
  %v841 = vsel %vm713, %v629, %v777
  %v842 = vsel %vm714, %v634, %v778
  %v843 = vsel %vm715, %v637, %v779
  %v844 = vsel %vm716, %v642, %v780
  %v845 = vsel %vm717, %v645, %v781
  %v846 = vsel %vm718, %v650, %v782
  %v847 = vsel %vm719, %v653, %v783
  %vm848 = vcmask 523264
  %849 = vst.msk [vmem:[%s3] sm:$0xff] %vm848, %v784
  %850 = vst.msk [vmem:[%s3 + $0x8] sm:$0xff] %vm848, %v785
  %851 = vst.msk [vmem:[%s3 + $0x10] sm:$0xff] %vm848, %v786
  %852 = vst.msk [vmem:[%s3 + $0x18] sm:$0xff] %vm848, %v787
  %853 = vst.msk [vmem:[%s3 + $0x20] sm:$0xff] %vm848, %v788
  %854 = vst.msk [vmem:[%s3 + $0x28] sm:$0xff] %vm848, %v789
  %855 = vst.msk [vmem:[%s3 + $0x30] sm:$0xff] %vm848, %v790
  %856 = vst.msk [vmem:[%s3 + $0x38] sm:$0xff] %vm848, %v791
  %857 = vst.msk [vmem:[%s3 + $0x40] sm:$0xff] %vm848, %v792
  %858 = vst.msk [vmem:[%s3 + $0x48] sm:$0xff] %vm848, %v793
  %859 = vst.msk [vmem:[%s3 + $0x50] sm:$0xff] %vm848, %v794
  %860 = vst.msk [vmem:[%s3 + $0x58] sm:$0xff] %vm848, %v795
  %861 = vst.msk [vmem:[%s3 + $0x60] sm:$0xff] %vm848, %v796
  %862 = vst.msk [vmem:[%s3 + $0x68] sm:$0xff] %vm848, %v797
  %863 = vst.msk [vmem:[%s3 + $0x70] sm:$0xff] %vm848, %v798
  %864 = vst.msk [vmem:[%s3 + $0x78] sm:$0xff] %vm848, %v799
  %865 = vst.msk [vmem:[%s3 + $0x80] sm:$0xff] %vm848, %v800
  %866 = vst.msk [vmem:[%s3 + $0x88] sm:$0xff] %vm848, %v801
  %867 = vst.msk [vmem:[%s3 + $0x90] sm:$0xff] %vm848, %v802
  %868 = vst.msk [vmem:[%s3 + $0x98] sm:$0xff] %vm848, %v803
  %869 = vst.msk [vmem:[%s3 + $0xa0] sm:$0xff] %vm848, %v804
  %870 = vst.msk [vmem:[%s3 + $0xa8] sm:$0xff] %vm848, %v805
  %871 = vst.msk [vmem:[%s3 + $0xb0] sm:$0xff] %vm848, %v806
  %872 = vst.msk [vmem:[%s3 + $0xb8] sm:$0xff] %vm848, %v807
  %873 = vst.msk [vmem:[%s3 + $0xc0] sm:$0xff] %vm848, %v808
  %874 = vst.msk [vmem:[%s3 + $0xc8] sm:$0xff] %vm848, %v809
  %875 = vst.msk [vmem:[%s3 + $0xd0] sm:$0xff] %vm848, %v810
  %876 = vst.msk [vmem:[%s3 + $0xd8] sm:$0xff] %vm848, %v811
  %877 = vst.msk [vmem:[%s3 + $0xe0] sm:$0xff] %vm848, %v812
  %878 = vst.msk [vmem:[%s3 + $0xe8] sm:$0xff] %vm848, %v813
  %879 = vst.msk [vmem:[%s3 + $0xf0] sm:$0xff] %vm848, %v814
  %880 = vst.msk [vmem:[%s3 + $0xf8] sm:$0xff] %vm848, %v815
  %881 = vst.msk [vmem:[%s3 + $0x100] sm:$0xff] %vm848, %v816
  %882 = vst.msk [vmem:[%s3 + $0x108] sm:$0xff] %vm848, %v817
  %883 = vst.msk [vmem:[%s3 + $0x110] sm:$0xff] %vm848, %v818
  %884 = vst.msk [vmem:[%s3 + $0x118] sm:$0xff] %vm848, %v819
  %885 = vst.msk [vmem:[%s3 + $0x120] sm:$0xff] %vm848, %v820
  %886 = vst.msk [vmem:[%s3 + $0x128] sm:$0xff] %vm848, %v821
  %887 = vst.msk [vmem:[%s3 + $0x130] sm:$0xff] %vm848, %v822
  %888 = vst.msk [vmem:[%s3 + $0x138] sm:$0xff] %vm848, %v823
  %889 = vst.msk [vmem:[%s3 + $0x140] sm:$0xff] %vm848, %v824
  %890 = vst.msk [vmem:[%s3 + $0x148] sm:$0xff] %vm848, %v825
  %891 = vst.msk [vmem:[%s3 + $0x150] sm:$0xff] %vm848, %v826
  %892 = vst.msk [vmem:[%s3 + $0x158] sm:$0xff] %vm848, %v827
  %893 = vst.msk [vmem:[%s3 + $0x160] sm:$0xff] %vm848, %v828
  %894 = vst.msk [vmem:[%s3 + $0x168] sm:$0xff] %vm848, %v829
  %895 = vst.msk [vmem:[%s3 + $0x170] sm:$0xff] %vm848, %v830
  %896 = vst.msk [vmem:[%s3 + $0x178] sm:$0xff] %vm848, %v831
  %897 = vst.msk [vmem:[%s3 + $0x180] sm:$0xff] %vm848, %v832
  %898 = vst.msk [vmem:[%s3 + $0x188] sm:$0xff] %vm848, %v833
  %899 = vst.msk [vmem:[%s3 + $0x190] sm:$0xff] %vm848, %v834
  %900 = vst.msk [vmem:[%s3 + $0x198] sm:$0xff] %vm848, %v835
  %901 = vst.msk [vmem:[%s3 + $0x1a0] sm:$0xff] %vm848, %v836
  %902 = vst.msk [vmem:[%s3 + $0x1a8] sm:$0xff] %vm848, %v837
  %903 = vst.msk [vmem:[%s3 + $0x1b0] sm:$0xff] %vm848, %v838
  %904 = vst.msk [vmem:[%s3 + $0x1b8] sm:$0xff] %vm848, %v839
  %905 = vst.msk [vmem:[%s3 + $0x1c0] sm:$0xff] %vm848, %v840
  %906 = vst.msk [vmem:[%s3 + $0x1c8] sm:$0xff] %vm848, %v841
  %907 = vst.msk [vmem:[%s3 + $0x1d0] sm:$0xff] %vm848, %v842
  %908 = vst.msk [vmem:[%s3 + $0x1d8] sm:$0xff] %vm848, %v843
  %909 = vst.msk [vmem:[%s3 + $0x1e0] sm:$0xff] %vm848, %v844
  %910 = vst.msk [vmem:[%s3 + $0x1e8] sm:$0xff] %vm848, %v845
  %911 = vst.msk [vmem:[%s3 + $0x1f0] sm:$0xff] %vm848, %v846
  %912 = vst.msk [vmem:[%s3 + $0x1f8] sm:$0xff] %vm848, %v847
  // Predicated region
  $region14: #{tpu_custom_call.1} parent=0 // pred_check
    _
  $region15: #{tpu_custom_call.1} parent=0 // pred_check_branch
    %914 = sbr.rel (0) target = $region17
  $region16: #{tpu_custom_call.1} parent=0 // pred_region
    _
  $region17: #{tpu_custom_call.1} parent=0 // pred_fallthru
    _
  // Predicated region
  $region18: #{tpu_custom_call.1} parent=0 // pred_check
    _
  $region19: #{tpu_custom_call.1} parent=0 // pred_check_branch
    %916 = sbr.rel (0) target = $region21
  $region20: #{tpu_custom_call.1} parent=0 // pred_region
    _
  $region21: #{tpu_custom_call.1} parent=0 // pred_fallthru
    _

</llo_original>
